<compile_context>
chip_gen: v5e
topology: v5e:2x2
jax: 0.10.0
libtpu: 0.0.40
codegen_flags: <defaults>
</compile_context>

<pallas_src>
import functools

import jax
import jax.numpy as jnp
from jax import lax
from jax.experimental import pallas as pl
from jax.experimental.pallas import tpu as pltpu


# ----------------------------------------------------------------------------
# Fused kernel: one grid step = one batch element
# ----------------------------------------------------------------------------
def _fused_attention_kernel(
    x_ref,        # (1, N, C)   activations for this batch
    w_qkv_ref,    # (C, 3C)     qkv weight, already (Cin, Cout)
    w_proj_ref,   # (C, C)      proj weight, already (Cin, Cout)
    b_proj_ref,   # (1, C)      proj bias
    o_ref,        # (1, N, C)   output
    *,
    num_heads,
    scale,
):
    x = x_ref[0]                                             # (N, C)
    n, c = x.shape
    dh = c // num_heads

    # qkv projection (f32 accumulation on the MXU)
    qkv = jnp.dot(x, w_qkv_ref[...], preferred_element_type=jnp.float32)  # (N, 3C)

    # qkv lays out as [q | k | v], each (N, C) with heads packed along C.
    head_outs = []
    for h in range(num_heads):                               # static unroll
        q = qkv[:, h * dh:(h + 1) * dh] * scale              # (N, Dh), scale folded in
        k = qkv[:, c + h * dh:c + (h + 1) * dh]              # (N, Dh)
        v = qkv[:, 2 * c + h * dh:2 * c + (h + 1) * dh]      # (N, Dh)

        # NT matmul: contract last dim of both -> (N, N), no explicit k.T
        s = lax.dot_general(
            q, k, (((1,), (1,)), ((), ())),
            preferred_element_type=jnp.float32,
        )
        s = s - jnp.max(s, axis=-1, keepdims=True)
        p = jnp.exp(s)                                       # unnormalized probs
        inv_l = pl.reciprocal(jnp.sum(p, axis=-1, keepdims=True), approx=True)

        # attn_drop has p=0.0 -> identity
        ctx = jnp.dot(p, v, preferred_element_type=jnp.float32) * inv_l  # (N, Dh)
        head_outs.append(ctx)

    ctx_all = jnp.concatenate(head_outs, axis=-1)            # (N, C), lane-dense slab

    # output projection + bias; proj_drop p=0.0 -> identity
    out = jnp.dot(ctx_all, w_proj_ref[...], preferred_element_type=jnp.float32)
    out = out + b_proj_ref[...]
    o_ref[0] = out.astype(o_ref.dtype)


# ----------------------------------------------------------------------------
# Wrapper
# ----------------------------------------------------------------------------
def prepare_params(torch_layout_params):
    """Transpose PyTorch-layout (out, in) weights ONCE to (in, out)."""
    return {
        "w_qkv_t": jnp.asarray(torch_layout_params["w_qkv"]).T,    # (C, 3C)
        "w_proj_t": jnp.asarray(torch_layout_params["w_proj"]).T,  # (C, C)
        "b_proj": jnp.asarray(torch_layout_params["b_proj"]),      # (C,)
    }


def attention_forward(x, params_t, num_heads):
    """x: (B, N, C) -> (B, N, C). Single fused Pallas kernel, grid over B."""
    B, N, C = x.shape
    head_dim = C // num_heads
    scale = head_dim ** (-0.5)

    w_qkv_t = params_t["w_qkv_t"]                 # (C, 3C)
    w_proj_t = params_t["w_proj_t"]               # (C, C)
    b_proj2d = params_t["b_proj"].reshape(1, C)   # (1, C)

    kern = functools.partial(
        _fused_attention_kernel, num_heads=num_heads, scale=scale
    )
    return pl.pallas_call(
        kern,
        out_shape=jax.ShapeDtypeStruct((B, N, C), x.dtype),
        grid=(B,),
        in_specs=[
            pl.BlockSpec((1, N, C), lambda b: (b, 0, 0)),
            pl.BlockSpec((C, 3 * C), lambda b: (0, 0)),
            pl.BlockSpec((C, C), lambda b: (0, 0)),
            pl.BlockSpec((1, C), lambda b: (0, 0)),
        ],
        out_specs=pl.BlockSpec((1, N, C), lambda b: (b, 0, 0)),
        compiler_params=pltpu.CompilerParams(
            dimension_semantics=("parallel",)
        ),
    )(x, w_qkv_t, w_proj_t, b_proj2d)


# ----------------------------------------------------------------------------
# Pure-JAX reference for correctness checking
# ----------------------------------------------------------------------------
def attention_reference(x, torch_layout_params, num_heads):
    B, N, C = x.shape
    head_dim = C // num_heads
    scale = head_dim ** (-0.5)
    qkv = x @ torch_layout_params["w_qkv"].T
    qkv = qkv.reshape(B, N, 3, num_heads, head_dim).transpose(2, 0, 3, 1, 4)
    q, k, v = qkv[0], qkv[1], qkv[2]
    attn = (q @ jnp.swapaxes(k, -2, -1)) * scale
    attn = jax.nn.softmax(attn, axis=-1)
    out = (attn @ v).transpose(0, 2, 1, 3).reshape(B, N, C)
    return out @ torch_layout_params["w_proj"].T + torch_layout_params["b_proj"]


# ----------------------------------------------------------------------------
if __name__ == "__main__":
    # Small shapes consistent with the module: B=2 batches, N=8 tokens,
    # C=32 channels, 8 heads -> head_dim=4.
    B, N, C = 2, 8, 32
    num_heads = 8

    key = jax.random.PRNGKey(0)
    kx, kq, kp, kb = jax.random.split(key, 4)

    x = jax.random.normal(kx, (B, N, C), dtype=jnp.float32)

    # Deterministic synthetic parameters in PyTorch nn.Linear layout.
    torch_params = {
        "w_qkv": 0.02 * jax.random.normal(kq, (3 * C, C), dtype=jnp.float32),
        "w_proj": 0.02 * jax.random.normal(kp, (C, C), dtype=jnp.float32),
        "b_proj": 0.01 * jax.random.normal(kb, (C,), dtype=jnp.float32),
    }
    # Transpose weights once, outside the forward pass.
    params_t = prepare_params(torch_params)

    out = attention_forward(x, params_t, num_heads)
    out = jax.block_until_ready(out)

    ref = attention_reference(x, torch_params, num_heads)
    assert out.shape == (B, N, C)
    # Tolerance relaxed slightly vs. exact softmax because the kernel uses the
    # EUP approximate reciprocal for the softmax normalization.
    assert jnp.allclose(out, ref, atol=1e-3, rtol=1e-3), (
        f"max abs err: {jnp.max(jnp.abs(out - ref))}"
    )

    print("KERNEL_OK")
</pallas_src>

<mosaic_0001>
module attributes {stable_mosaic.version = 11 : i64} {
  func.func @_fused_attention_kernel(%arg0: i32, %arg1: memref<1x8x32xf32, #tpu.memory_space<vmem>>, %arg2: memref<32x96xf32, #tpu.memory_space<vmem>>, %arg3: memref<32x32xf32, #tpu.memory_space<vmem>>, %arg4: memref<1x32xf32, #tpu.memory_space<vmem>>, %arg5: memref<1x8x32xf32, #tpu.memory_space<vmem>>) attributes {dimension_semantics = [#tpu.dimension_semantics<parallel>], iteration_bounds = array<i64: 2>, scalar_prefetch = 0 : i64, scratch_operands = 0 : i64, tpu.core_type = #tpu.core_type<tc>, window_params = [{transform_indices = @transform_0, window_bounds = array<i64: 1, 8, 32>}, {pipeline_mode = #tpu.pipeline_mode<synchronous>, transform_indices = @transform_1, window_bounds = array<i64: 32, 96>}, {pipeline_mode = #tpu.pipeline_mode<synchronous>, transform_indices = @transform_2, window_bounds = array<i64: 32, 32>}, {pipeline_mode = #tpu.pipeline_mode<synchronous>, transform_indices = @transform_3, window_bounds = array<i64: 1, 32>}, {transform_indices = @transform_4, window_bounds = array<i64: 1, 8, 32>}]} {
    %c0 = arith.constant 0 : index
    %c0_0 = arith.constant 0 : index
    %c0_1 = arith.constant 0 : index
    %0 = vector.load %arg1[%c0, %c0_0, %c0_1] : memref<1x8x32xf32, #tpu.memory_space<vmem>>, vector<1x8x32xf32>
    %1 = vector.shape_cast %0 : vector<1x8x32xf32> to vector<8x32xf32>
    %c0_2 = arith.constant 0 : index
    %c0_3 = arith.constant 0 : index
    %2 = vector.load %arg2[%c0_2, %c0_3] : memref<32x96xf32, #tpu.memory_space<vmem>>, vector<32x96xf32>
    %cst = arith.constant dense<0.000000e+00> : vector<8x96xf32>
    %3 = tpu.matmul %1, %2, %cst {dimension_numbers = #tpu.dot_dimension_numbers<[1], [0], [0], [1], [0, 0, 1, 1], [], []>} : vector<8x32xf32>, vector<32x96xf32>, vector<8x96xf32> -> vector<8x96xf32>
    %4 = vector.extract_strided_slice %3 {offsets = [0, 0], sizes = [8, 4], strides = [1, 1]} : vector<8x96xf32> to vector<8x4xf32>
    %cst_4 = arith.constant 5.000000e-01 : f32
    %5 = vector.broadcast %cst_4 : f32 to vector<8x4xf32>
    %6 = arith.mulf %4, %5 : vector<8x4xf32>
    %7 = vector.extract_strided_slice %3 {offsets = [0, 32], sizes = [8, 4], strides = [1, 1]} : vector<8x96xf32> to vector<8x4xf32>
    %8 = vector.extract_strided_slice %3 {offsets = [0, 64], sizes = [8, 4], strides = [1, 1]} : vector<8x96xf32> to vector<8x4xf32>
    %cst_5 = arith.constant dense<0.000000e+00> : vector<8x8xf32>
    %9 = tpu.matmul %6, %7, %cst_5 {dimension_numbers = #tpu.dot_dimension_numbers<[1], [1], [0], [0], [0, 0, 1, 0], [], []>} : vector<8x4xf32>, vector<8x4xf32>, vector<8x8xf32> -> vector<8x8xf32>
    %cst_6 = arith.constant dense<0xFF800000> : vector<8xf32>
    %10 = vector.multi_reduction <maximumf>, %9, %cst_6 [1] : vector<8x8xf32> to vector<8xf32>
    %11 = vector.shape_cast %10 : vector<8xf32> to vector<8x1xf32>
    %12 = vector.broadcast %11 : vector<8x1xf32> to vector<8x8xf32>
    %13 = arith.subf %9, %12 : vector<8x8xf32>
    %14 = math.exp %13 : vector<8x8xf32>
    %cst_7 = arith.constant dense<0.000000e+00> : vector<8xf32>
    %15 = vector.multi_reduction <add>, %14, %cst_7 [1] : vector<8x8xf32> to vector<8xf32>
    %16 = vector.shape_cast %15 : vector<8xf32> to vector<8x1xf32>
    %17 = tpu.reciprocal %16 {approx = true} : vector<8x1xf32> -> vector<8x1xf32>
    %cst_8 = arith.constant dense<0.000000e+00> : vector<8x4xf32>
    %18 = tpu.matmul %14, %8, %cst_8 {dimension_numbers = #tpu.dot_dimension_numbers<[1], [0], [0], [1], [0, 0, 1, 1], [], []>} : vector<8x8xf32>, vector<8x4xf32>, vector<8x4xf32> -> vector<8x4xf32>
    %19 = vector.broadcast %17 : vector<8x1xf32> to vector<8x4xf32>
    %20 = arith.mulf %18, %19 : vector<8x4xf32>
    %21 = vector.extract_strided_slice %3 {offsets = [0, 4], sizes = [8, 4], strides = [1, 1]} : vector<8x96xf32> to vector<8x4xf32>
    %cst_9 = arith.constant 5.000000e-01 : f32
    %22 = vector.broadcast %cst_9 : f32 to vector<8x4xf32>
    %23 = arith.mulf %21, %22 : vector<8x4xf32>
    %24 = vector.extract_strided_slice %3 {offsets = [0, 36], sizes = [8, 4], strides = [1, 1]} : vector<8x96xf32> to vector<8x4xf32>
    %25 = vector.extract_strided_slice %3 {offsets = [0, 68], sizes = [8, 4], strides = [1, 1]} : vector<8x96xf32> to vector<8x4xf32>
    %cst_10 = arith.constant dense<0.000000e+00> : vector<8x8xf32>
    %26 = tpu.matmul %23, %24, %cst_10 {dimension_numbers = #tpu.dot_dimension_numbers<[1], [1], [0], [0], [0, 0, 1, 0], [], []>} : vector<8x4xf32>, vector<8x4xf32>, vector<8x8xf32> -> vector<8x8xf32>
    %cst_11 = arith.constant dense<0xFF800000> : vector<8xf32>
    %27 = vector.multi_reduction <maximumf>, %26, %cst_11 [1] : vector<8x8xf32> to vector<8xf32>
    %28 = vector.shape_cast %27 : vector<8xf32> to vector<8x1xf32>
    %29 = vector.broadcast %28 : vector<8x1xf32> to vector<8x8xf32>
    %30 = arith.subf %26, %29 : vector<8x8xf32>
    %31 = math.exp %30 : vector<8x8xf32>
    %cst_12 = arith.constant dense<0.000000e+00> : vector<8xf32>
    %32 = vector.multi_reduction <add>, %31, %cst_12 [1] : vector<8x8xf32> to vector<8xf32>
    %33 = vector.shape_cast %32 : vector<8xf32> to vector<8x1xf32>
    %34 = tpu.reciprocal %33 {approx = true} : vector<8x1xf32> -> vector<8x1xf32>
    %cst_13 = arith.constant dense<0.000000e+00> : vector<8x4xf32>
    %35 = tpu.matmul %31, %25, %cst_13 {dimension_numbers = #tpu.dot_dimension_numbers<[1], [0], [0], [1], [0, 0, 1, 1], [], []>} : vector<8x8xf32>, vector<8x4xf32>, vector<8x4xf32> -> vector<8x4xf32>
    %36 = vector.broadcast %34 : vector<8x1xf32> to vector<8x4xf32>
    %37 = arith.mulf %35, %36 : vector<8x4xf32>
    %38 = vector.extract_strided_slice %3 {offsets = [0, 8], sizes = [8, 4], strides = [1, 1]} : vector<8x96xf32> to vector<8x4xf32>
    %cst_14 = arith.constant 5.000000e-01 : f32
    %39 = vector.broadcast %cst_14 : f32 to vector<8x4xf32>
    %40 = arith.mulf %38, %39 : vector<8x4xf32>
    %41 = vector.extract_strided_slice %3 {offsets = [0, 40], sizes = [8, 4], strides = [1, 1]} : vector<8x96xf32> to vector<8x4xf32>
    %42 = vector.extract_strided_slice %3 {offsets = [0, 72], sizes = [8, 4], strides = [1, 1]} : vector<8x96xf32> to vector<8x4xf32>
    %cst_15 = arith.constant dense<0.000000e+00> : vector<8x8xf32>
    %43 = tpu.matmul %40, %41, %cst_15 {dimension_numbers = #tpu.dot_dimension_numbers<[1], [1], [0], [0], [0, 0, 1, 0], [], []>} : vector<8x4xf32>, vector<8x4xf32>, vector<8x8xf32> -> vector<8x8xf32>
    %cst_16 = arith.constant dense<0xFF800000> : vector<8xf32>
    %44 = vector.multi_reduction <maximumf>, %43, %cst_16 [1] : vector<8x8xf32> to vector<8xf32>
    %45 = vector.shape_cast %44 : vector<8xf32> to vector<8x1xf32>
    %46 = vector.broadcast %45 : vector<8x1xf32> to vector<8x8xf32>
    %47 = arith.subf %43, %46 : vector<8x8xf32>
    %48 = math.exp %47 : vector<8x8xf32>
    %cst_17 = arith.constant dense<0.000000e+00> : vector<8xf32>
    %49 = vector.multi_reduction <add>, %48, %cst_17 [1] : vector<8x8xf32> to vector<8xf32>
    %50 = vector.shape_cast %49 : vector<8xf32> to vector<8x1xf32>
    %51 = tpu.reciprocal %50 {approx = true} : vector<8x1xf32> -> vector<8x1xf32>
    %cst_18 = arith.constant dense<0.000000e+00> : vector<8x4xf32>
    %52 = tpu.matmul %48, %42, %cst_18 {dimension_numbers = #tpu.dot_dimension_numbers<[1], [0], [0], [1], [0, 0, 1, 1], [], []>} : vector<8x8xf32>, vector<8x4xf32>, vector<8x4xf32> -> vector<8x4xf32>
    %53 = vector.broadcast %51 : vector<8x1xf32> to vector<8x4xf32>
    %54 = arith.mulf %52, %53 : vector<8x4xf32>
    %55 = vector.extract_strided_slice %3 {offsets = [0, 12], sizes = [8, 4], strides = [1, 1]} : vector<8x96xf32> to vector<8x4xf32>
    %cst_19 = arith.constant 5.000000e-01 : f32
    %56 = vector.broadcast %cst_19 : f32 to vector<8x4xf32>
    %57 = arith.mulf %55, %56 : vector<8x4xf32>
    %58 = vector.extract_strided_slice %3 {offsets = [0, 44], sizes = [8, 4], strides = [1, 1]} : vector<8x96xf32> to vector<8x4xf32>
    %59 = vector.extract_strided_slice %3 {offsets = [0, 76], sizes = [8, 4], strides = [1, 1]} : vector<8x96xf32> to vector<8x4xf32>
    %cst_20 = arith.constant dense<0.000000e+00> : vector<8x8xf32>
    %60 = tpu.matmul %57, %58, %cst_20 {dimension_numbers = #tpu.dot_dimension_numbers<[1], [1], [0], [0], [0, 0, 1, 0], [], []>} : vector<8x4xf32>, vector<8x4xf32>, vector<8x8xf32> -> vector<8x8xf32>
    %cst_21 = arith.constant dense<0xFF800000> : vector<8xf32>
    %61 = vector.multi_reduction <maximumf>, %60, %cst_21 [1] : vector<8x8xf32> to vector<8xf32>
    %62 = vector.shape_cast %61 : vector<8xf32> to vector<8x1xf32>
    %63 = vector.broadcast %62 : vector<8x1xf32> to vector<8x8xf32>
    %64 = arith.subf %60, %63 : vector<8x8xf32>
    %65 = math.exp %64 : vector<8x8xf32>
    %cst_22 = arith.constant dense<0.000000e+00> : vector<8xf32>
    %66 = vector.multi_reduction <add>, %65, %cst_22 [1] : vector<8x8xf32> to vector<8xf32>
    %67 = vector.shape_cast %66 : vector<8xf32> to vector<8x1xf32>
    %68 = tpu.reciprocal %67 {approx = true} : vector<8x1xf32> -> vector<8x1xf32>
    %cst_23 = arith.constant dense<0.000000e+00> : vector<8x4xf32>
    %69 = tpu.matmul %65, %59, %cst_23 {dimension_numbers = #tpu.dot_dimension_numbers<[1], [0], [0], [1], [0, 0, 1, 1], [], []>} : vector<8x8xf32>, vector<8x4xf32>, vector<8x4xf32> -> vector<8x4xf32>
    %70 = vector.broadcast %68 : vector<8x1xf32> to vector<8x4xf32>
    %71 = arith.mulf %69, %70 : vector<8x4xf32>
    %72 = vector.extract_strided_slice %3 {offsets = [0, 16], sizes = [8, 4], strides = [1, 1]} : vector<8x96xf32> to vector<8x4xf32>
    %cst_24 = arith.constant 5.000000e-01 : f32
    %73 = vector.broadcast %cst_24 : f32 to vector<8x4xf32>
    %74 = arith.mulf %72, %73 : vector<8x4xf32>
    %75 = vector.extract_strided_slice %3 {offsets = [0, 48], sizes = [8, 4], strides = [1, 1]} : vector<8x96xf32> to vector<8x4xf32>
    %76 = vector.extract_strided_slice %3 {offsets = [0, 80], sizes = [8, 4], strides = [1, 1]} : vector<8x96xf32> to vector<8x4xf32>
    %cst_25 = arith.constant dense<0.000000e+00> : vector<8x8xf32>
    %77 = tpu.matmul %74, %75, %cst_25 {dimension_numbers = #tpu.dot_dimension_numbers<[1], [1], [0], [0], [0, 0, 1, 0], [], []>} : vector<8x4xf32>, vector<8x4xf32>, vector<8x8xf32> -> vector<8x8xf32>
    %cst_26 = arith.constant dense<0xFF800000> : vector<8xf32>
    %78 = vector.multi_reduction <maximumf>, %77, %cst_26 [1] : vector<8x8xf32> to vector<8xf32>
    %79 = vector.shape_cast %78 : vector<8xf32> to vector<8x1xf32>
    %80 = vector.broadcast %79 : vector<8x1xf32> to vector<8x8xf32>
    %81 = arith.subf %77, %80 : vector<8x8xf32>
    %82 = math.exp %81 : vector<8x8xf32>
    %cst_27 = arith.constant dense<0.000000e+00> : vector<8xf32>
    %83 = vector.multi_reduction <add>, %82, %cst_27 [1] : vector<8x8xf32> to vector<8xf32>
    %84 = vector.shape_cast %83 : vector<8xf32> to vector<8x1xf32>
    %85 = tpu.reciprocal %84 {approx = true} : vector<8x1xf32> -> vector<8x1xf32>
    %cst_28 = arith.constant dense<0.000000e+00> : vector<8x4xf32>
    %86 = tpu.matmul %82, %76, %cst_28 {dimension_numbers = #tpu.dot_dimension_numbers<[1], [0], [0], [1], [0, 0, 1, 1], [], []>} : vector<8x8xf32>, vector<8x4xf32>, vector<8x4xf32> -> vector<8x4xf32>
    %87 = vector.broadcast %85 : vector<8x1xf32> to vector<8x4xf32>
    %88 = arith.mulf %86, %87 : vector<8x4xf32>
    %89 = vector.extract_strided_slice %3 {offsets = [0, 20], sizes = [8, 4], strides = [1, 1]} : vector<8x96xf32> to vector<8x4xf32>
    %cst_29 = arith.constant 5.000000e-01 : f32
    %90 = vector.broadcast %cst_29 : f32 to vector<8x4xf32>
    %91 = arith.mulf %89, %90 : vector<8x4xf32>
    %92 = vector.extract_strided_slice %3 {offsets = [0, 52], sizes = [8, 4], strides = [1, 1]} : vector<8x96xf32> to vector<8x4xf32>
    %93 = vector.extract_strided_slice %3 {offsets = [0, 84], sizes = [8, 4], strides = [1, 1]} : vector<8x96xf32> to vector<8x4xf32>
    %cst_30 = arith.constant dense<0.000000e+00> : vector<8x8xf32>
    %94 = tpu.matmul %91, %92, %cst_30 {dimension_numbers = #tpu.dot_dimension_numbers<[1], [1], [0], [0], [0, 0, 1, 0], [], []>} : vector<8x4xf32>, vector<8x4xf32>, vector<8x8xf32> -> vector<8x8xf32>
    %cst_31 = arith.constant dense<0xFF800000> : vector<8xf32>
    %95 = vector.multi_reduction <maximumf>, %94, %cst_31 [1] : vector<8x8xf32> to vector<8xf32>
    %96 = vector.shape_cast %95 : vector<8xf32> to vector<8x1xf32>
    %97 = vector.broadcast %96 : vector<8x1xf32> to vector<8x8xf32>
    %98 = arith.subf %94, %97 : vector<8x8xf32>
    %99 = math.exp %98 : vector<8x8xf32>
    %cst_32 = arith.constant dense<0.000000e+00> : vector<8xf32>
    %100 = vector.multi_reduction <add>, %99, %cst_32 [1] : vector<8x8xf32> to vector<8xf32>
    %101 = vector.shape_cast %100 : vector<8xf32> to vector<8x1xf32>
    %102 = tpu.reciprocal %101 {approx = true} : vector<8x1xf32> -> vector<8x1xf32>
    %cst_33 = arith.constant dense<0.000000e+00> : vector<8x4xf32>
    %103 = tpu.matmul %99, %93, %cst_33 {dimension_numbers = #tpu.dot_dimension_numbers<[1], [0], [0], [1], [0, 0, 1, 1], [], []>} : vector<8x8xf32>, vector<8x4xf32>, vector<8x4xf32> -> vector<8x4xf32>
    %104 = vector.broadcast %102 : vector<8x1xf32> to vector<8x4xf32>
    %105 = arith.mulf %103, %104 : vector<8x4xf32>
    %106 = vector.extract_strided_slice %3 {offsets = [0, 24], sizes = [8, 4], strides = [1, 1]} : vector<8x96xf32> to vector<8x4xf32>
    %cst_34 = arith.constant 5.000000e-01 : f32
    %107 = vector.broadcast %cst_34 : f32 to vector<8x4xf32>
    %108 = arith.mulf %106, %107 : vector<8x4xf32>
    %109 = vector.extract_strided_slice %3 {offsets = [0, 56], sizes = [8, 4], strides = [1, 1]} : vector<8x96xf32> to vector<8x4xf32>
    %110 = vector.extract_strided_slice %3 {offsets = [0, 88], sizes = [8, 4], strides = [1, 1]} : vector<8x96xf32> to vector<8x4xf32>
    %cst_35 = arith.constant dense<0.000000e+00> : vector<8x8xf32>
    %111 = tpu.matmul %108, %109, %cst_35 {dimension_numbers = #tpu.dot_dimension_numbers<[1], [1], [0], [0], [0, 0, 1, 0], [], []>} : vector<8x4xf32>, vector<8x4xf32>, vector<8x8xf32> -> vector<8x8xf32>
    %cst_36 = arith.constant dense<0xFF800000> : vector<8xf32>
    %112 = vector.multi_reduction <maximumf>, %111, %cst_36 [1] : vector<8x8xf32> to vector<8xf32>
    %113 = vector.shape_cast %112 : vector<8xf32> to vector<8x1xf32>
    %114 = vector.broadcast %113 : vector<8x1xf32> to vector<8x8xf32>
    %115 = arith.subf %111, %114 : vector<8x8xf32>
    %116 = math.exp %115 : vector<8x8xf32>
    %cst_37 = arith.constant dense<0.000000e+00> : vector<8xf32>
    %117 = vector.multi_reduction <add>, %116, %cst_37 [1] : vector<8x8xf32> to vector<8xf32>
    %118 = vector.shape_cast %117 : vector<8xf32> to vector<8x1xf32>
    %119 = tpu.reciprocal %118 {approx = true} : vector<8x1xf32> -> vector<8x1xf32>
    %cst_38 = arith.constant dense<0.000000e+00> : vector<8x4xf32>
    %120 = tpu.matmul %116, %110, %cst_38 {dimension_numbers = #tpu.dot_dimension_numbers<[1], [0], [0], [1], [0, 0, 1, 1], [], []>} : vector<8x8xf32>, vector<8x4xf32>, vector<8x4xf32> -> vector<8x4xf32>
    %121 = vector.broadcast %119 : vector<8x1xf32> to vector<8x4xf32>
    %122 = arith.mulf %120, %121 : vector<8x4xf32>
    %123 = vector.extract_strided_slice %3 {offsets = [0, 28], sizes = [8, 4], strides = [1, 1]} : vector<8x96xf32> to vector<8x4xf32>
    %cst_39 = arith.constant 5.000000e-01 : f32
    %124 = vector.broadcast %cst_39 : f32 to vector<8x4xf32>
    %125 = arith.mulf %123, %124 : vector<8x4xf32>
    %126 = vector.extract_strided_slice %3 {offsets = [0, 60], sizes = [8, 4], strides = [1, 1]} : vector<8x96xf32> to vector<8x4xf32>
    %127 = vector.extract_strided_slice %3 {offsets = [0, 92], sizes = [8, 4], strides = [1, 1]} : vector<8x96xf32> to vector<8x4xf32>
    %cst_40 = arith.constant dense<0.000000e+00> : vector<8x8xf32>
    %128 = tpu.matmul %125, %126, %cst_40 {dimension_numbers = #tpu.dot_dimension_numbers<[1], [1], [0], [0], [0, 0, 1, 0], [], []>} : vector<8x4xf32>, vector<8x4xf32>, vector<8x8xf32> -> vector<8x8xf32>
    %cst_41 = arith.constant dense<0xFF800000> : vector<8xf32>
    %129 = vector.multi_reduction <maximumf>, %128, %cst_41 [1] : vector<8x8xf32> to vector<8xf32>
    %130 = vector.shape_cast %129 : vector<8xf32> to vector<8x1xf32>
    %131 = vector.broadcast %130 : vector<8x1xf32> to vector<8x8xf32>
    %132 = arith.subf %128, %131 : vector<8x8xf32>
    %133 = math.exp %132 : vector<8x8xf32>
    %cst_42 = arith.constant dense<0.000000e+00> : vector<8xf32>
    %134 = vector.multi_reduction <add>, %133, %cst_42 [1] : vector<8x8xf32> to vector<8xf32>
    %135 = vector.shape_cast %134 : vector<8xf32> to vector<8x1xf32>
    %136 = tpu.reciprocal %135 {approx = true} : vector<8x1xf32> -> vector<8x1xf32>
    %cst_43 = arith.constant dense<0.000000e+00> : vector<8x4xf32>
    %137 = tpu.matmul %133, %127, %cst_43 {dimension_numbers = #tpu.dot_dimension_numbers<[1], [0], [0], [1], [0, 0, 1, 1], [], []>} : vector<8x8xf32>, vector<8x4xf32>, vector<8x4xf32> -> vector<8x4xf32>
    %138 = vector.broadcast %136 : vector<8x1xf32> to vector<8x4xf32>
    %139 = arith.mulf %137, %138 : vector<8x4xf32>
    %140 = tpu.concatenate %20, %37, %54, %71, %88, %105, %122, %139 in 1 : vector<8x4xf32>, vector<8x4xf32>, vector<8x4xf32>, vector<8x4xf32>, vector<8x4xf32>, vector<8x4xf32>, vector<8x4xf32>, vector<8x4xf32> -> vector<8x32xf32>
    %c0_44 = arith.constant 0 : index
    %c0_45 = arith.constant 0 : index
    %141 = vector.load %arg3[%c0_44, %c0_45] : memref<32x32xf32, #tpu.memory_space<vmem>>, vector<32x32xf32>
    %cst_46 = arith.constant dense<0.000000e+00> : vector<8x32xf32>
    %142 = tpu.matmul %140, %141, %cst_46 {dimension_numbers = #tpu.dot_dimension_numbers<[1], [0], [0], [1], [0, 0, 1, 1], [], []>} : vector<8x32xf32>, vector<32x32xf32>, vector<8x32xf32> -> vector<8x32xf32>
    %c0_47 = arith.constant 0 : index
    %c0_48 = arith.constant 0 : index
    %143 = vector.load %arg4[%c0_47, %c0_48] : memref<1x32xf32, #tpu.memory_space<vmem>>, vector<1x32xf32>
    %144 = vector.broadcast %143 : vector<1x32xf32> to vector<8x32xf32>
    %145 = arith.addf %142, %144 : vector<8x32xf32>
    %c0_49 = arith.constant 0 : index
    %c0_50 = arith.constant 0 : index
    %c0_51 = arith.constant 0 : index
    %146 = vector.load %arg5[%c0_49, %c0_50, %c0_51] : memref<1x8x32xf32, #tpu.memory_space<vmem>>, vector<1x8x32xf32>
    %147 = vector.shape_cast %146 : vector<1x8x32xf32> to vector<8x32xf32>
    %148 = vector.shape_cast %145 : vector<8x32xf32> to vector<1x8x32xf32>
    tpu.vector_store %arg5[%c0_49, %c0_50, %c0_51], %148 {strides = array<i32>} : memref<1x8x32xf32, #tpu.memory_space<vmem>>, vector<1x8x32xf32>,
    return
  }
  func.func @transform_0(%arg0: i32) -> (i32, i32, i32) {
    %c0_i32 = arith.constant 0 : i32
    %c0_i32_0 = arith.constant 0 : i32
    %c0_i32_1 = arith.constant 0 : i32
    return %arg0, %c0_i32, %c0_i32_0 : i32, i32, i32
  }
  func.func @transform_1(%arg0: i32) -> (i32, i32) {
    %c0_i32 = arith.constant 0 : i32
    %c0_i32_0 = arith.constant 0 : i32
    %c0_i32_1 = arith.constant 0 : i32
    return %c0_i32, %c0_i32_0 : i32, i32
  }
  func.func @transform_2(%arg0: i32) -> (i32, i32) {
    %c0_i32 = arith.constant 0 : i32
    %c0_i32_0 = arith.constant 0 : i32
    %c0_i32_1 = arith.constant 0 : i32
    return %c0_i32, %c0_i32_0 : i32, i32
  }
  func.func @transform_3(%arg0: i32) -> (i32, i32) {
    %c0_i32 = arith.constant 0 : i32
    %c0_i32_0 = arith.constant 0 : i32
    %c0_i32_1 = arith.constant 0 : i32
    return %c0_i32, %c0_i32_0 : i32, i32
  }
  func.func @transform_4(%arg0: i32) -> (i32, i32, i32) {
    %c0_i32 = arith.constant 0 : i32
    %c0_i32_0 = arith.constant 0 : i32
    %c0_i32_1 = arith.constant 0 : i32
    return %arg0, %c0_i32, %c0_i32_0 : i32, i32, i32
  }
}

</mosaic_0001>

<llo_original>
// kernel: tpu_custom_call.1
$region0: #{tpu_custom_call.1}
  #allocation0 [shape = 'u32[]', space=smem, size = 0x4, offset = 0x4, fixed_abs, tag = 'smem constant byte address 0x4 - core index']
  #allocation1 [shape = 'u32[72,128]{1,0:T(1,128)}', space=vmem, size = 0x9000, scoped, tag = 'internal scratch']
  %s0 = inlined_call_operand.hbm [shape: f32[2,8,32], index: 0, kind: input, shape index: {}]
  %s1 = inlined_call_operand.hbm [shape: f32[32,96], index: 1, kind: input, shape index: {}]
  %s2 = inlined_call_operand.hbm [shape: f32[32,32], index: 2, kind: input, shape index: {}]
  %s3 = inlined_call_operand.vmem [shape: f32[1,32], index: 3, kind: input, shape index: {}]
  %s4 = inlined_call_operand.hbm [shape: f32[2,8,32], index: 4, kind: output, shape index: {}]
  %s5 = sld [smem:[#allocation0]]
  $region61: #{tpu_custom_call.1} parent=0
    _
  %s7 = ssub.s32 1, %s5
  %s8 = scalar_select 0, %s7, %s5
  $region1: #{tpu_custom_call.1} parent=0
    #allocation2 [shape = 'u8[8192]{0}', space=vmem, size = 0x2000, scoped, tag = 'input window, operand 0']
    #allocation3 [shape = 's32[2]{0}', space=sflag, size = 0x8, scoped, tag = 'scoped memory for tpu_custom_call.1']
    #allocation4 [shape = 's32[2]{0}', space=sflag, size = 0x8, scoped, tag = 'scoped memory for tpu_custom_call.1']
    #allocation5 [shape = 'u8[16384]{0}', space=vmem, size = 0x4000, scoped, tag = 'input window, operand 1, single buffered']
    #allocation6 [shape = 's32[1]{0}', space=sflag, size = 0x4, scoped, tag = 'scoped memory for tpu_custom_call.1']
    #allocation7 [shape = 'u8[16384]{0}', space=vmem, size = 0x4000, scoped, tag = 'input window, operand 2, single buffered']
    #allocation8 [shape = 'u8[8192]{0}', space=vmem, size = 0x2000, scoped, tag = 'output window, operand 0']
    %9 = vsyncpa [#allocation3], 0
    %s10 = scalar_lea.sflag [#allocation3], 1
    %11 = vsyncpa %s10, 0
    %12 = vsyncpa [#allocation6], 0
    %13 = vsyncpa [#allocation4], 0
    %s14 = scalar_lea.sflag [#allocation4], 1
    %15 = vsyncpa %s14, 0
    loop: start=0, step=1, limit=4
    $region2: #{tpu_custom_call.1} parent=1 // loop_pre_header
      _
    $region3: #{tpu_custom_call.1} parent=1 // loop_header
      %s17 = sphi 0, %s21
      %p18 = scmp.ge.s32.totalorder %s17, 4
      %s27 = sphi 0, %s29
      %s30 = sphi 0, %s27
      %s31 = sphi 0, %s30
      %s47 = sphi 0, %s31
      %s51 = sphi 0, %s51
      %s53 = sphi 0, %s51
      %s54 = sphi 0, %s53
      %s68 = sphi 0, %s54
      %s72 = sphi 0, %s72
      %s74 = sphi 0, %s72
      %s75 = sphi 0, %s74
      %s89 = sphi 0, %s75
      %s93 = sphi 0, %s93
      %s95 = sphi 0, %s93
      %s96 = sphi 0, %s95
      %s110 = sphi 0, %s96
      %s116 = sphi 0, %s118
      %s119 = sphi 0, %s116
      %s120 = sphi 0, %s119
      %s136 = sphi 0, %s120
    $region4: #{tpu_custom_call.1} parent=1 // loop_header_branch
      %20 = sbr.rel (%p18) target = $region8
    $region5: #{tpu_custom_call.1} parent=1 // loop_body
      %s22 = ssub.s32 %s17, 1
      %s23 = ssub.s32 %s17, 2
      %s24 = sadd.s32 %s17, 1
      %s25 = ssub.s32 %s17, %s24
      %p26 = scmp.eq.s32.totalorder %s25, 0
      %s28 = sadd.s32 %s27, 1
      %s29 = scalar_select %p26, %s27, %s28
      %p32 = pneg %p26
      %p33 = scmp.eq.s32.totalorder %s17, 1
      %p34 = por %p32, %p33
      %p35 = scmp.ne.s32.totalorder %s27, %s30
      %p36 = scmp.eq.s32.totalorder %s17, 0
      %p37 = por %p35, %p36
      %p38 = scmp.ne.s32.totalorder %s27, %s30
      %p39 = scmp.eq.s32.totalorder %s22, 1
      %p40 = por %p38, %p39
      %p41 = scmp.ne.s32.totalorder %s30, %s31
      %p42 = scmp.eq.s32.totalorder %s22, 0
      %p43 = por %p41, %p42
      %p44 = scmp.ne.s32.totalorder %s30, %s31
      %p45 = scmp.eq.s32.totalorder %s23, 1
      %p46 = por %p44, %p45
      %p48 = scmp.ne.s32.totalorder %s31, %s47
      %p49 = scmp.eq.s32.totalorder %s23, 0
      %p50 = por %p48, %p49
      %s52 = sadd.s32 %s51, 1
      %p55 = scmp.eq.s32.totalorder %s17, 1
      %p56 = scmp.ne.s32.totalorder %s51, %s53
      %p57 = scmp.eq.s32.totalorder %s17, 0
      %p58 = por %p56, %p57
      %p59 = scmp.ne.s32.totalorder %s51, %s53
      %p60 = scmp.eq.s32.totalorder %s22, 1
      %p61 = por %p59, %p60
      %p62 = scmp.ne.s32.totalorder %s53, %s54
      %p63 = scmp.eq.s32.totalorder %s22, 0
      %p64 = por %p62, %p63
      %p65 = scmp.ne.s32.totalorder %s53, %s54
      %p66 = scmp.eq.s32.totalorder %s23, 1
      %p67 = por %p65, %p66
      %p69 = scmp.ne.s32.totalorder %s54, %s68
      %p70 = scmp.eq.s32.totalorder %s23, 0
      %p71 = por %p69, %p70
      %s73 = sadd.s32 %s72, 1
      %p76 = scmp.eq.s32.totalorder %s17, 1
      %p77 = scmp.ne.s32.totalorder %s72, %s74
      %p78 = scmp.eq.s32.totalorder %s17, 0
      %p79 = por %p77, %p78
      %p80 = scmp.ne.s32.totalorder %s72, %s74
      %p81 = scmp.eq.s32.totalorder %s22, 1
      %p82 = por %p80, %p81
      %p83 = scmp.ne.s32.totalorder %s74, %s75
      %p84 = scmp.eq.s32.totalorder %s22, 0
      %p85 = por %p83, %p84
      %p86 = scmp.ne.s32.totalorder %s74, %s75
      %p87 = scmp.eq.s32.totalorder %s23, 1
      %p88 = por %p86, %p87
      %p90 = scmp.ne.s32.totalorder %s75, %s89
      %p91 = scmp.eq.s32.totalorder %s23, 0
      %p92 = por %p90, %p91
      %s94 = sadd.s32 %s93, 1
      %p97 = scmp.eq.s32.totalorder %s17, 1
      %p98 = scmp.ne.s32.totalorder %s93, %s95
      %p99 = scmp.eq.s32.totalorder %s17, 0
      %p100 = por %p98, %p99
      %p101 = scmp.ne.s32.totalorder %s93, %s95
      %p102 = scmp.eq.s32.totalorder %s22, 1
      %p103 = por %p101, %p102
      %p104 = scmp.ne.s32.totalorder %s95, %s96
      %p105 = scmp.eq.s32.totalorder %s22, 0
      %p106 = por %p104, %p105
      %p107 = scmp.ne.s32.totalorder %s95, %s96
      %p108 = scmp.eq.s32.totalorder %s23, 1
      %p109 = por %p107, %p108
      %p111 = scmp.ne.s32.totalorder %s96, %s110
      %p112 = scmp.eq.s32.totalorder %s23, 0
      %p113 = por %p111, %p112
      %s114 = ssub.s32 %s17, %s24
      %p115 = scmp.eq.s32.totalorder %s114, 0
      %s117 = sadd.s32 %s116, 1
      %s118 = scalar_select %p115, %s116, %s117
      %p121 = pneg %p115
      %p122 = scmp.eq.s32.totalorder %s17, 1
      %p123 = por %p121, %p122
      %p124 = scmp.ne.s32.totalorder %s116, %s119
      %p125 = scmp.eq.s32.totalorder %s17, 0
      %p126 = por %p124, %p125
      %p127 = scmp.ne.s32.totalorder %s116, %s119
      %p128 = scmp.eq.s32.totalorder %s22, 1
      %p129 = por %p127, %p128
      %p130 = scmp.ne.s32.totalorder %s119, %s120
      %p131 = scmp.eq.s32.totalorder %s22, 0
      %p132 = por %p130, %p131
      %p133 = scmp.ne.s32.totalorder %s119, %s120
      %p134 = scmp.eq.s32.totalorder %s23, 1
      %p135 = por %p133, %p134
      %p137 = scmp.ne.s32.totalorder %s120, %s136
      %p138 = scmp.eq.s32.totalorder %s23, 0
      %p139 = por %p137, %p138
      %p140 = scmp.le.s32.totalorder 1, %s17
      %p141 = scmp.lt.s32.totalorder %s17, 3
      %p142 = pnand %p140, %p141
      %p143 = pneg %p142
      // Predicated region
      $region9: #{tpu_custom_call.1} parent=5 // pred_check
        _
      $region10: #{tpu_custom_call.1} parent=5 // pred_check_branch
        %145 = sbr.rel (%p142) target = $region12
      $region11: #{tpu_custom_call.1} parent=5 // pred_region
        %s146 = ssub.s32 %s17, 1
        // Predicated region
        $region13: #{tpu_custom_call.1} parent=11 // pred_check
          %p147 = pneg %p64
        $region14: #{tpu_custom_call.1} parent=11 // pred_check_branch
          %149 = sbr.rel (%p147) target = $region16
        $region15: #{tpu_custom_call.1} parent=11 // pred_region
          %151 = vsyncadd [#allocation6], 0
          %s152 = sshll.u32 %s1, 4
          %s153 = int_to_ptr.hbm [resolvable:$true] %s152
          %s154 = sshll.u32 [#allocation5], 4
          %s155 = int_to_ptr.vmem [resolvable:$true] %s154
          %160 = dma.hbm_to_vmem [thread:$0]  %s153, 512, %s155, [#allocation6], 128, 128, 8
        $region16: #{tpu_custom_call.1} parent=11 // pred_fallthru
          _
        // Predicated region
        $region17: #{tpu_custom_call.1} parent=11 // pred_check
          %p161 = pneg %p85
        $region18: #{tpu_custom_call.1} parent=11 // pred_check_branch
          %163 = sbr.rel (%p161) target = $region20
        $region19: #{tpu_custom_call.1} parent=11 // pred_region
          %165 = vsyncadd [#allocation6], 0
          %s166 = sshll.u32 %s2, 4
          %s167 = int_to_ptr.hbm [resolvable:$true] %s166
          %s168 = sshll.u32 [#allocation7], 4
          %s169 = int_to_ptr.vmem [resolvable:$true] %s168
          %174 = dma.hbm_to_vmem [thread:$0]  %s167, 512, %s169, [#allocation6], 128, 128, 8
        $region20: #{tpu_custom_call.1} parent=11 // pred_fallthru
          _
        // Predicated region
        $region21: #{tpu_custom_call.1} parent=11 // pred_check
          %p175 = pneg %p106
        $region22: #{tpu_custom_call.1} parent=11 // pred_check_branch
          %177 = sbr.rel (%p175) target = $region24
        $region23: #{tpu_custom_call.1} parent=11 // pred_region
          _
        $region24: #{tpu_custom_call.1} parent=11 // pred_fallthru
          _
      $region12: #{tpu_custom_call.1} parent=5 // pred_fallthru
        _
      %p178 = scmp.lt.s32.totalorder %s17, 2
      // Predicated region
      $region25: #{tpu_custom_call.1} parent=5 // pred_check
        %p179 = pneg %p178
      $region26: #{tpu_custom_call.1} parent=5 // pred_check_branch
        %181 = sbr.rel (%p179) target = $region28
      $region27: #{tpu_custom_call.1} parent=5 // pred_region
        // Predicated region
        $region29: #{tpu_custom_call.1} parent=27 // pred_check
          %p182 = pneg %p37
        $region30: #{tpu_custom_call.1} parent=27 // pred_check_branch
          %184 = sbr.rel (%p182) target = $region32
        $region31: #{tpu_custom_call.1} parent=27 // pred_region
          %s185 = sand.u32 %s27, 1
          %s186 = scalar_lea.sflag [#allocation3], %s185
          %s187 = sand.u32 %s27, 1
          %s188 = smul.addr %s187, 8
          %s189 = scalar_lea.vmem [#allocation2], %s188
          %191 = vsyncadd %s186, 0
          %s192 = smul.addr %s17, 8
          %s193 = scalar_lea.hbm %s0, %s192
          %s195 = sshll.u32 %s193, 4
          %s196 = int_to_ptr.hbm [resolvable:$true] %s195
          %s197 = sshll.u32 %s189, 4
          %s198 = int_to_ptr.vmem [resolvable:$true] %s197
          %200 = dma.hbm_to_vmem [thread:$0]  %s196, 128, %s198, %s186
        $region32: #{tpu_custom_call.1} parent=27 // pred_fallthru
          _
      $region28: #{tpu_custom_call.1} parent=5 // pred_fallthru
        _
      %p201 = scmp.le.s32.totalorder 1, %s17
      %p202 = scmp.lt.s32.totalorder %s17, 3
      %p203 = pnand %p201, %p202
      %p204 = pneg %p203
      // Predicated region
      $region33: #{tpu_custom_call.1} parent=5 // pred_check
        _
      $region34: #{tpu_custom_call.1} parent=5 // pred_check_branch
        %206 = sbr.rel (%p203) target = $region36
      $region35: #{tpu_custom_call.1} parent=5 // pred_region
        %s207 = ssub.s32 %s17, 1
        %s208 = sand.u32 %s30, 1
        %s209 = scalar_lea.sflag [#allocation3], %s208
        %s210 = sand.u32 %s30, 1
        %s211 = smul.addr %s210, 8
        %s212 = scalar_lea.vmem [#allocation2], %s211
        // Predicated region
        $region37: #{tpu_custom_call.1} parent=35 // pred_check
          %p213 = pneg %p43
        $region38: #{tpu_custom_call.1} parent=35 // pred_check_branch
          %215 = sbr.rel (%p213) target = $region40
        $region39: #{tpu_custom_call.1} parent=35 // pred_region
          %217 = dma.done %s209, 128
        $region40: #{tpu_custom_call.1} parent=35 // pred_fallthru
          _
        // Predicated region
        $region41: #{tpu_custom_call.1} parent=35 // pred_check
          %p218 = pneg %p64
        $region42: #{tpu_custom_call.1} parent=35 // pred_check_branch
          %220 = sbr.rel (%p218) target = $region44
        $region43: #{tpu_custom_call.1} parent=35 // pred_region
          %222 = dma.done [#allocation6], 512
        $region44: #{tpu_custom_call.1} parent=35 // pred_fallthru
          _
        // Predicated region
        $region45: #{tpu_custom_call.1} parent=35 // pred_check
          %p223 = pneg %p85
        $region46: #{tpu_custom_call.1} parent=35 // pred_check_branch
          %225 = sbr.rel (%p223) target = $region48
        $region47: #{tpu_custom_call.1} parent=35 // pred_region
          %227 = dma.done [#allocation6], 512
        $region48: #{tpu_custom_call.1} parent=35 // pred_fallthru
          _
        %s228 = sand.u32 %s30, 1
        %s229 = scalar_lea.sflag [#allocation3], %s228
        %s230 = sand.u32 %s30, 1
        %s231 = smul.addr %s230, 8
        %s232 = scalar_lea.vmem [#allocation2], %s231
        %p233 = pneg %p43
        %p234 = pneg %p40
        %p235 = pneg %p64
        %p236 = pneg %p61
        %p237 = pneg %p85
        %p238 = pneg %p82
        %p239 = pneg %p106
        %p240 = pneg %p103
        %p241 = pneg %p132
        %p242 = pneg %p129
        %s243 = sand.u32 %s119, 1
        %s244 = scalar_lea.sflag [#allocation4], %s243
        %s245 = sand.u32 %s119, 1
        %s246 = smul.addr %s245, 8
        %s247 = scalar_lea.vmem [#allocation8], %s246
        %v248 = vld [vmem:[%s212] sm:$0xff]
        %v249 = vld [vmem:[#allocation5] sm:$0xff]
        %v250 = vld [vmem:[#allocation5 + $0x8] sm:$0xff]
        %v251 = vld [vmem:[#allocation5 + $0x10] sm:$0xff]
        %v252 = vld [vmem:[#allocation5 + $0x18] sm:$0xff]
        %vm253 = vcmask 261120
        %v255 = vsel %vm253, %v248, 0
        %257 = vmatpush.msra.mxu0 0.0
        %258 = vmatpush.msra.mxu0 0.0
        %259 = vmatpush.msra.mxu0 0.0
        %260 = vmatpush.msra.mxu0 0.0
        %261 = vmatpush.msra.mxu0 0.0
        %262 = vmatpush.msra.mxu0 0.0
        %263 = vmatpush.msra.mxu0 0.0
        %264 = vmatpush.msra.mxu0 0.0
        %265 = vmatpush.msra.mxu0 0.0
        %266 = vmatpush.msra.mxu0 0.0
        %267 = vmatpush.msra.mxu0 0.0
        %268 = vmatpush.msra.mxu0 0.0
        %269 = vmatpush.msra.mxu0 %v252
        %270 = vmatpush.msra.mxu0 %v251
        %271 = vmatpush.msra.mxu0 %v250
        %272 = vmatpush.msra.mxu0 %v249
        %273 = vmatmul.f32.gmra.mxu0 %v255
        %v274 = vpop.f32.mrf.mxu0
        %v275 = vadd.f32 0.0, %v274
        %276 = vdwg.mxu0
        %v277 = vmul.f32 %v275, 0.5
        %279 = vrot.lane.b32.xlu0 %v275, 96
        %v280 = vpop.permute.xlu0 %279
        %vm281 = vcmask 31744
        %v283 = vsel %vm281, %v277, 0
        %v285 = vsel %vm281, %v280, 0
        %287 = vmatpush.xpose.msra.mxu0 0.0
        %288 = vmatpush.xpose.msra.mxu0 0.0
        %289 = vmatpush.xpose.msra.mxu0 0.0
        %290 = vmatpush.xpose.msra.mxu0 0.0
        %291 = vmatpush.xpose.msra.mxu0 0.0
        %292 = vmatpush.xpose.msra.mxu0 0.0
        %293 = vmatpush.xpose.msra.mxu0 0.0
        %294 = vmatpush.xpose.msra.mxu0 0.0
        %295 = vmatpush.xpose.msra.mxu0 0.0
        %296 = vmatpush.xpose.msra.mxu0 0.0
        %297 = vmatpush.xpose.msra.mxu0 0.0
        %298 = vmatpush.xpose.msra.mxu0 0.0
        %299 = vmatpush.xpose.msra.mxu0 0.0
        %300 = vmatpush.xpose.msra.mxu0 0.0
        %301 = vmatpush.xpose.msra.mxu0 0.0
        %302 = vmatpush.xpose.msra.mxu0 %v285
        %303 = vmatmul.f32.gmra.mxu0 %v283
        %v304 = vpop.f32.mrf.mxu0
        %v305 = vadd.f32 0.0, %v304
        %306 = vdwg.mxu0
        %vm307 = vcmask 64512
        %v308 = vsel %vm307, %v305, -inf
        %309 = vmax.xlane.f32.xlu0 %v308
        %v310 = vpop.xlane.xlu0 %309
        %v311 = vsub.f32 %v305, %v310
        %v312 = vmul.f32 %v311, 1.442695
        %v313 = vpow.pop %v312
        %v314 = vsel %vm307, %v313, 0.0
        %315 = vadd.xlane.f32.xlu0 %v314
        %v316 = vpop.xlane.xlu0 %315
        %v317 = vrcp.pop %v316
        %318 = vrot.lane.b32.xlu0 %v275, 64
        %v319 = vpop.permute.xlu0 %318
        %v322 = vsel %vm307, %v313, 0
        %324 = vmatpush.msra.mxu0 0.0
        %325 = vmatpush.msra.mxu0 0.0
        %326 = vmatpush.msra.mxu0 0.0
        %327 = vmatpush.msra.mxu0 0.0
        %328 = vmatpush.msra.mxu0 0.0
        %329 = vmatpush.msra.mxu0 0.0
        %330 = vmatpush.msra.mxu0 0.0
        %331 = vmatpush.msra.mxu0 0.0
        %332 = vmatpush.msra.mxu0 0.0
        %333 = vmatpush.msra.mxu0 0.0
        %334 = vmatpush.msra.mxu0 0.0
        %335 = vmatpush.msra.mxu0 0.0
        %336 = vmatpush.msra.mxu0 0.0
        %337 = vmatpush.msra.mxu0 0.0
        %338 = vmatpush.msra.mxu0 0.0
        %339 = vmatpush.msra.mxu0 %v319
        %340 = vmatmul.f32.gmra.mxu0 %v322
        %v341 = vpop.f32.mrf.mxu0
        %v342 = vadd.f32 0.0, %v341
        %343 = vdwg.mxu0
        %v344 = vmul.f32 %v342, %v317
        %345 = vrot.lane.b32.xlu0 %v277, 124
        %v346 = vpop.permute.xlu0 %345
        %347 = vrot.lane.b32.xlu0 %v275, 92
        %v348 = vpop.permute.xlu0 %347
        %v349 = vsel %vm281, %v346, 0
        %v351 = vsel %vm281, %v348, 0
        %353 = vmatpush.xpose.msra.mxu0 0.0
        %354 = vmatpush.xpose.msra.mxu0 0.0
        %355 = vmatpush.xpose.msra.mxu0 0.0
        %356 = vmatpush.xpose.msra.mxu0 0.0
        %357 = vmatpush.xpose.msra.mxu0 0.0
        %358 = vmatpush.xpose.msra.mxu0 0.0
        %359 = vmatpush.xpose.msra.mxu0 0.0
        %360 = vmatpush.xpose.msra.mxu0 0.0
        %361 = vmatpush.xpose.msra.mxu0 0.0
        %362 = vmatpush.xpose.msra.mxu0 0.0
        %363 = vmatpush.xpose.msra.mxu0 0.0
        %364 = vmatpush.xpose.msra.mxu0 0.0
        %365 = vmatpush.xpose.msra.mxu0 0.0
        %366 = vmatpush.xpose.msra.mxu0 0.0
        %367 = vmatpush.xpose.msra.mxu0 0.0
        %368 = vmatpush.xpose.msra.mxu0 %v351
        %369 = vmatmul.f32.gmra.mxu0 %v349
        %v370 = vpop.f32.mrf.mxu0
        %v371 = vadd.f32 0.0, %v370
        %372 = vdwg.mxu0
        %v373 = vsel %vm307, %v371, -inf
        %374 = vmax.xlane.f32.xlu0 %v373
        %v375 = vpop.xlane.xlu0 %374
        %v376 = vsub.f32 %v371, %v375
        %v377 = vmul.f32 %v376, 1.442695
        %v378 = vpow.pop %v377
        %v379 = vsel %vm307, %v378, 0.0
        %380 = vadd.xlane.f32.xlu0 %v379
        %v381 = vpop.xlane.xlu0 %380
        %v382 = vrcp.pop %v381
        %383 = vrot.lane.b32.xlu0 %v275, 60
        %v384 = vpop.permute.xlu0 %383
        %v387 = vsel %vm307, %v378, 0
        %389 = vmatpush.msra.mxu0 0.0
        %390 = vmatpush.msra.mxu0 0.0
        %391 = vmatpush.msra.mxu0 0.0
        %392 = vmatpush.msra.mxu0 0.0
        %393 = vmatpush.msra.mxu0 0.0
        %394 = vmatpush.msra.mxu0 0.0
        %395 = vmatpush.msra.mxu0 0.0
        %396 = vmatpush.msra.mxu0 0.0
        %397 = vmatpush.msra.mxu0 0.0
        %398 = vmatpush.msra.mxu0 0.0
        %399 = vmatpush.msra.mxu0 0.0
        %400 = vmatpush.msra.mxu0 0.0
        %401 = vmatpush.msra.mxu0 0.0
        %402 = vmatpush.msra.mxu0 0.0
        %403 = vmatpush.msra.mxu0 0.0
        %404 = vmatpush.msra.mxu0 %v384
        %405 = vmatmul.f32.gmra.mxu0 %v387
        %v406 = vpop.f32.mrf.mxu0
        %v407 = vadd.f32 0.0, %v406
        %408 = vdwg.mxu0
        %v409 = vmul.f32 %v407, %v382
        %410 = vrot.lane.b32.xlu0 %v277, 120
        %v411 = vpop.permute.xlu0 %410
        %412 = vrot.lane.b32.xlu0 %v275, 88
        %v413 = vpop.permute.xlu0 %412
        %v414 = vsel %vm281, %v411, 0
        %v416 = vsel %vm281, %v413, 0
        %418 = vmatpush.xpose.msra.mxu0 0.0
        %419 = vmatpush.xpose.msra.mxu0 0.0
        %420 = vmatpush.xpose.msra.mxu0 0.0
        %421 = vmatpush.xpose.msra.mxu0 0.0
        %422 = vmatpush.xpose.msra.mxu0 0.0
        %423 = vmatpush.xpose.msra.mxu0 0.0
        %424 = vmatpush.xpose.msra.mxu0 0.0
        %425 = vmatpush.xpose.msra.mxu0 0.0
        %426 = vmatpush.xpose.msra.mxu0 0.0
        %427 = vmatpush.xpose.msra.mxu0 0.0
        %428 = vmatpush.xpose.msra.mxu0 0.0
        %429 = vmatpush.xpose.msra.mxu0 0.0
        %430 = vmatpush.xpose.msra.mxu0 0.0
        %431 = vmatpush.xpose.msra.mxu0 0.0
        %432 = vmatpush.xpose.msra.mxu0 0.0
        %433 = vmatpush.xpose.msra.mxu0 %v416
        %434 = vmatmul.f32.gmra.mxu0 %v414
        %v435 = vpop.f32.mrf.mxu0
        %v436 = vadd.f32 0.0, %v435
        %437 = vdwg.mxu0
        %v438 = vsel %vm307, %v436, -inf
        %439 = vmax.xlane.f32.xlu0 %v438
        %v440 = vpop.xlane.xlu0 %439
        %v441 = vsub.f32 %v436, %v440
        %v442 = vmul.f32 %v441, 1.442695
        %v443 = vpow.pop %v442
        %v444 = vsel %vm307, %v443, 0.0
        %445 = vadd.xlane.f32.xlu0 %v444
        %v446 = vpop.xlane.xlu0 %445
        %v447 = vrcp.pop %v446
        %448 = vrot.lane.b32.xlu0 %v275, 56
        %v449 = vpop.permute.xlu0 %448
        %v452 = vsel %vm307, %v443, 0
        %454 = vmatpush.msra.mxu0 0.0
        %455 = vmatpush.msra.mxu0 0.0
        %456 = vmatpush.msra.mxu0 0.0
        %457 = vmatpush.msra.mxu0 0.0
        %458 = vmatpush.msra.mxu0 0.0
        %459 = vmatpush.msra.mxu0 0.0
        %460 = vmatpush.msra.mxu0 0.0
        %461 = vmatpush.msra.mxu0 0.0
        %462 = vmatpush.msra.mxu0 0.0
        %463 = vmatpush.msra.mxu0 0.0
        %464 = vmatpush.msra.mxu0 0.0
        %465 = vmatpush.msra.mxu0 0.0
        %466 = vmatpush.msra.mxu0 0.0
        %467 = vmatpush.msra.mxu0 0.0
        %468 = vmatpush.msra.mxu0 0.0
        %469 = vmatpush.msra.mxu0 %v449
        %470 = vmatmul.f32.gmra.mxu0 %v452
        %v471 = vpop.f32.mrf.mxu0
        %v472 = vadd.f32 0.0, %v471
        %473 = vdwg.mxu0
        %v474 = vmul.f32 %v472, %v447
        %475 = vrot.lane.b32.xlu0 %v277, 116
        %v476 = vpop.permute.xlu0 %475
        %477 = vrot.lane.b32.xlu0 %v275, 84
        %v478 = vpop.permute.xlu0 %477
        %v479 = vsel %vm281, %v476, 0
        %v481 = vsel %vm281, %v478, 0
        %483 = vmatpush.xpose.msra.mxu0 0.0
        %484 = vmatpush.xpose.msra.mxu0 0.0
        %485 = vmatpush.xpose.msra.mxu0 0.0
        %486 = vmatpush.xpose.msra.mxu0 0.0
        %487 = vmatpush.xpose.msra.mxu0 0.0
        %488 = vmatpush.xpose.msra.mxu0 0.0
        %489 = vmatpush.xpose.msra.mxu0 0.0
        %490 = vmatpush.xpose.msra.mxu0 0.0
        %491 = vmatpush.xpose.msra.mxu0 0.0
        %492 = vmatpush.xpose.msra.mxu0 0.0
        %493 = vmatpush.xpose.msra.mxu0 0.0
        %494 = vmatpush.xpose.msra.mxu0 0.0
        %495 = vmatpush.xpose.msra.mxu0 0.0
        %496 = vmatpush.xpose.msra.mxu0 0.0
        %497 = vmatpush.xpose.msra.mxu0 0.0
        %498 = vmatpush.xpose.msra.mxu0 %v481
        %499 = vmatmul.f32.gmra.mxu0 %v479
        %v500 = vpop.f32.mrf.mxu0
        %v501 = vadd.f32 0.0, %v500
        %502 = vdwg.mxu0
        %v503 = vsel %vm307, %v501, -inf
        %504 = vmax.xlane.f32.xlu0 %v503
        %v505 = vpop.xlane.xlu0 %504
        %v506 = vsub.f32 %v501, %v505
        %v507 = vmul.f32 %v506, 1.442695
        %v508 = vpow.pop %v507
        %v509 = vsel %vm307, %v508, 0.0
        %510 = vadd.xlane.f32.xlu0 %v509
        %v511 = vpop.xlane.xlu0 %510
        %v512 = vrcp.pop %v511
        %513 = vrot.lane.b32.xlu0 %v275, 52
        %v514 = vpop.permute.xlu0 %513
        %v517 = vsel %vm307, %v508, 0
        %519 = vmatpush.msra.mxu0 0.0
        %520 = vmatpush.msra.mxu0 0.0
        %521 = vmatpush.msra.mxu0 0.0
        %522 = vmatpush.msra.mxu0 0.0
        %523 = vmatpush.msra.mxu0 0.0
        %524 = vmatpush.msra.mxu0 0.0
        %525 = vmatpush.msra.mxu0 0.0
        %526 = vmatpush.msra.mxu0 0.0
        %527 = vmatpush.msra.mxu0 0.0
        %528 = vmatpush.msra.mxu0 0.0
        %529 = vmatpush.msra.mxu0 0.0
        %530 = vmatpush.msra.mxu0 0.0
        %531 = vmatpush.msra.mxu0 0.0
        %532 = vmatpush.msra.mxu0 0.0
        %533 = vmatpush.msra.mxu0 0.0
        %534 = vmatpush.msra.mxu0 %v514
        %535 = vmatmul.f32.gmra.mxu0 %v517
        %v536 = vpop.f32.mrf.mxu0
        %v537 = vadd.f32 0.0, %v536
        %538 = vdwg.mxu0
        %v539 = vmul.f32 %v537, %v512
        %540 = vrot.lane.b32.xlu0 %v277, 112
        %v541 = vpop.permute.xlu0 %540
        %542 = vrot.lane.b32.xlu0 %v275, 80
        %v543 = vpop.permute.xlu0 %542
        %v544 = vsel %vm281, %v541, 0
        %v546 = vsel %vm281, %v543, 0
        %548 = vmatpush.xpose.msra.mxu0 0.0
        %549 = vmatpush.xpose.msra.mxu0 0.0
        %550 = vmatpush.xpose.msra.mxu0 0.0
        %551 = vmatpush.xpose.msra.mxu0 0.0
        %552 = vmatpush.xpose.msra.mxu0 0.0
        %553 = vmatpush.xpose.msra.mxu0 0.0
        %554 = vmatpush.xpose.msra.mxu0 0.0
        %555 = vmatpush.xpose.msra.mxu0 0.0
        %556 = vmatpush.xpose.msra.mxu0 0.0
        %557 = vmatpush.xpose.msra.mxu0 0.0
        %558 = vmatpush.xpose.msra.mxu0 0.0
        %559 = vmatpush.xpose.msra.mxu0 0.0
        %560 = vmatpush.xpose.msra.mxu0 0.0
        %561 = vmatpush.xpose.msra.mxu0 0.0
        %562 = vmatpush.xpose.msra.mxu0 0.0
        %563 = vmatpush.xpose.msra.mxu0 %v546
        %564 = vmatmul.f32.gmra.mxu0 %v544
        %v565 = vpop.f32.mrf.mxu0
        %v566 = vadd.f32 0.0, %v565
        %567 = vdwg.mxu0
        %v568 = vsel %vm307, %v566, -inf
        %569 = vmax.xlane.f32.xlu0 %v568
        %v570 = vpop.xlane.xlu0 %569
        %v571 = vsub.f32 %v566, %v570
        %v572 = vmul.f32 %v571, 1.442695
        %v573 = vpow.pop %v572
        %v574 = vsel %vm307, %v573, 0.0
        %575 = vadd.xlane.f32.xlu0 %v574
        %v576 = vpop.xlane.xlu0 %575
        %v577 = vrcp.pop %v576
        %578 = vrot.lane.b32.xlu0 %v275, 48
        %v579 = vpop.permute.xlu0 %578
        %v582 = vsel %vm307, %v573, 0
        %584 = vmatpush.msra.mxu0 0.0
        %585 = vmatpush.msra.mxu0 0.0
        %586 = vmatpush.msra.mxu0 0.0
        %587 = vmatpush.msra.mxu0 0.0
        %588 = vmatpush.msra.mxu0 0.0
        %589 = vmatpush.msra.mxu0 0.0
        %590 = vmatpush.msra.mxu0 0.0
        %591 = vmatpush.msra.mxu0 0.0
        %592 = vmatpush.msra.mxu0 0.0
        %593 = vmatpush.msra.mxu0 0.0
        %594 = vmatpush.msra.mxu0 0.0
        %595 = vmatpush.msra.mxu0 0.0
        %596 = vmatpush.msra.mxu0 0.0
        %597 = vmatpush.msra.mxu0 0.0
        %598 = vmatpush.msra.mxu0 0.0
        %599 = vmatpush.msra.mxu0 %v579
        %600 = vmatmul.f32.gmra.mxu0 %v582
        %v601 = vpop.f32.mrf.mxu0
        %v602 = vadd.f32 0.0, %v601
        %603 = vdwg.mxu0
        %v604 = vmul.f32 %v602, %v577
        %605 = vrot.lane.b32.xlu0 %v277, 108
        %v606 = vpop.permute.xlu0 %605
        %607 = vrot.lane.b32.xlu0 %v275, 76
        %v608 = vpop.permute.xlu0 %607
        %v609 = vsel %vm281, %v606, 0
        %v611 = vsel %vm281, %v608, 0
        %613 = vmatpush.xpose.msra.mxu0 0.0
        %614 = vmatpush.xpose.msra.mxu0 0.0
        %615 = vmatpush.xpose.msra.mxu0 0.0
        %616 = vmatpush.xpose.msra.mxu0 0.0
        %617 = vmatpush.xpose.msra.mxu0 0.0
        %618 = vmatpush.xpose.msra.mxu0 0.0
        %619 = vmatpush.xpose.msra.mxu0 0.0
        %620 = vmatpush.xpose.msra.mxu0 0.0
        %621 = vmatpush.xpose.msra.mxu0 0.0
        %622 = vmatpush.xpose.msra.mxu0 0.0
        %623 = vmatpush.xpose.msra.mxu0 0.0
        %624 = vmatpush.xpose.msra.mxu0 0.0
        %625 = vmatpush.xpose.msra.mxu0 0.0
        %626 = vmatpush.xpose.msra.mxu0 0.0
        %627 = vmatpush.xpose.msra.mxu0 0.0
        %628 = vmatpush.xpose.msra.mxu0 %v611
        %629 = vmatmul.f32.gmra.mxu0 %v609
        %v630 = vpop.f32.mrf.mxu0
        %v631 = vadd.f32 0.0, %v630
        %632 = vdwg.mxu0
        %v633 = vsel %vm307, %v631, -inf
        %634 = vmax.xlane.f32.xlu0 %v633
        %v635 = vpop.xlane.xlu0 %634
        %v636 = vsub.f32 %v631, %v635
        %v637 = vmul.f32 %v636, 1.442695
        %v638 = vpow.pop %v637
        %v639 = vsel %vm307, %v638, 0.0
        %640 = vadd.xlane.f32.xlu0 %v639
        %v641 = vpop.xlane.xlu0 %640
        %v642 = vrcp.pop %v641
        %643 = vrot.lane.b32.xlu0 %v275, 44
        %v644 = vpop.permute.xlu0 %643
        %v647 = vsel %vm307, %v638, 0
        %649 = vmatpush.msra.mxu0 0.0
        %650 = vmatpush.msra.mxu0 0.0
        %651 = vmatpush.msra.mxu0 0.0
        %652 = vmatpush.msra.mxu0 0.0
        %653 = vmatpush.msra.mxu0 0.0
        %654 = vmatpush.msra.mxu0 0.0
        %655 = vmatpush.msra.mxu0 0.0
        %656 = vmatpush.msra.mxu0 0.0
        %657 = vmatpush.msra.mxu0 0.0
        %658 = vmatpush.msra.mxu0 0.0
        %659 = vmatpush.msra.mxu0 0.0
        %660 = vmatpush.msra.mxu0 0.0
        %661 = vmatpush.msra.mxu0 0.0
        %662 = vmatpush.msra.mxu0 0.0
        %663 = vmatpush.msra.mxu0 0.0
        %664 = vmatpush.msra.mxu0 %v644
        %665 = vmatmul.f32.gmra.mxu0 %v647
        %v666 = vpop.f32.mrf.mxu0
        %v667 = vadd.f32 0.0, %v666
        %668 = vdwg.mxu0
        %v669 = vmul.f32 %v667, %v642
        %670 = vrot.lane.b32.xlu0 %v277, 104
        %v671 = vpop.permute.xlu0 %670
        %672 = vrot.lane.b32.xlu0 %v275, 72
        %v673 = vpop.permute.xlu0 %672
        %v674 = vsel %vm281, %v671, 0
        %v676 = vsel %vm281, %v673, 0
        %678 = vmatpush.xpose.msra.mxu0 0.0
        %679 = vmatpush.xpose.msra.mxu0 0.0
        %680 = vmatpush.xpose.msra.mxu0 0.0
        %681 = vmatpush.xpose.msra.mxu0 0.0
        %682 = vmatpush.xpose.msra.mxu0 0.0
        %683 = vmatpush.xpose.msra.mxu0 0.0
        %684 = vmatpush.xpose.msra.mxu0 0.0
        %685 = vmatpush.xpose.msra.mxu0 0.0
        %686 = vmatpush.xpose.msra.mxu0 0.0
        %687 = vmatpush.xpose.msra.mxu0 0.0
        %688 = vmatpush.xpose.msra.mxu0 0.0
        %689 = vmatpush.xpose.msra.mxu0 0.0
        %690 = vmatpush.xpose.msra.mxu0 0.0
        %691 = vmatpush.xpose.msra.mxu0 0.0
        %692 = vmatpush.xpose.msra.mxu0 0.0
        %693 = vmatpush.xpose.msra.mxu0 %v676
        %694 = vmatmul.f32.gmra.mxu0 %v674
        %v695 = vpop.f32.mrf.mxu0
        %v696 = vadd.f32 0.0, %v695
        %697 = vdwg.mxu0
        %v698 = vsel %vm307, %v696, -inf
        %699 = vmax.xlane.f32.xlu0 %v698
        %v700 = vpop.xlane.xlu0 %699
        %v701 = vsub.f32 %v696, %v700
        %v702 = vmul.f32 %v701, 1.442695
        %v703 = vpow.pop %v702
        %v704 = vsel %vm307, %v703, 0.0
        %705 = vadd.xlane.f32.xlu0 %v704
        %v706 = vpop.xlane.xlu0 %705
        %v707 = vrcp.pop %v706
        %708 = vrot.lane.b32.xlu0 %v275, 40
        %v709 = vpop.permute.xlu0 %708
        %v712 = vsel %vm307, %v703, 0
        %714 = vmatpush.msra.mxu0 0.0
        %715 = vmatpush.msra.mxu0 0.0
        %716 = vmatpush.msra.mxu0 0.0
        %717 = vmatpush.msra.mxu0 0.0
        %718 = vmatpush.msra.mxu0 0.0
        %719 = vmatpush.msra.mxu0 0.0
        %720 = vmatpush.msra.mxu0 0.0
        %721 = vmatpush.msra.mxu0 0.0
        %722 = vmatpush.msra.mxu0 0.0
        %723 = vmatpush.msra.mxu0 0.0
        %724 = vmatpush.msra.mxu0 0.0
        %725 = vmatpush.msra.mxu0 0.0
        %726 = vmatpush.msra.mxu0 0.0
        %727 = vmatpush.msra.mxu0 0.0
        %728 = vmatpush.msra.mxu0 0.0
        %729 = vmatpush.msra.mxu0 %v709
        %730 = vmatmul.f32.gmra.mxu0 %v712
        %v731 = vpop.f32.mrf.mxu0
        %v732 = vadd.f32 0.0, %v731
        %733 = vdwg.mxu0
        %v734 = vmul.f32 %v732, %v707
        %735 = vrot.lane.b32.xlu0 %v277, 100
        %v736 = vpop.permute.xlu0 %735
        %737 = vrot.lane.b32.xlu0 %v275, 68
        %v738 = vpop.permute.xlu0 %737
        %v739 = vsel %vm281, %v736, 0
        %v741 = vsel %vm281, %v738, 0
        %743 = vmatpush.xpose.msra.mxu0 0.0
        %744 = vmatpush.xpose.msra.mxu0 0.0
        %745 = vmatpush.xpose.msra.mxu0 0.0
        %746 = vmatpush.xpose.msra.mxu0 0.0
        %747 = vmatpush.xpose.msra.mxu0 0.0
        %748 = vmatpush.xpose.msra.mxu0 0.0
        %749 = vmatpush.xpose.msra.mxu0 0.0
        %750 = vmatpush.xpose.msra.mxu0 0.0
        %751 = vmatpush.xpose.msra.mxu0 0.0
        %752 = vmatpush.xpose.msra.mxu0 0.0
        %753 = vmatpush.xpose.msra.mxu0 0.0
        %754 = vmatpush.xpose.msra.mxu0 0.0
        %755 = vmatpush.xpose.msra.mxu0 0.0
        %756 = vmatpush.xpose.msra.mxu0 0.0
        %757 = vmatpush.xpose.msra.mxu0 0.0
        %758 = vmatpush.xpose.msra.mxu0 %v741
        %759 = vmatmul.f32.gmra.mxu0 %v739
        %v760 = vpop.f32.mrf.mxu0
        %v761 = vadd.f32 0.0, %v760
        %762 = vdwg.mxu0
        %v763 = vsel %vm307, %v761, -inf
        %764 = vmax.xlane.f32.xlu0 %v763
        %v765 = vpop.xlane.xlu0 %764
        %v766 = vsub.f32 %v761, %v765
        %v767 = vmul.f32 %v766, 1.442695
        %v768 = vpow.pop %v767
        %v769 = vsel %vm307, %v768, 0.0
        %770 = vadd.xlane.f32.xlu0 %v769
        %v771 = vpop.xlane.xlu0 %770
        %v772 = vrcp.pop %v771
        %773 = vrot.lane.b32.xlu0 %v275, 36
        %v774 = vpop.permute.xlu0 %773
        %v777 = vsel %vm307, %v768, 0
        %779 = vmatpush.msra.mxu0 0.0
        %780 = vmatpush.msra.mxu0 0.0
        %781 = vmatpush.msra.mxu0 0.0
        %782 = vmatpush.msra.mxu0 0.0
        %783 = vmatpush.msra.mxu0 0.0
        %784 = vmatpush.msra.mxu0 0.0
        %785 = vmatpush.msra.mxu0 0.0
        %786 = vmatpush.msra.mxu0 0.0
        %787 = vmatpush.msra.mxu0 0.0
        %788 = vmatpush.msra.mxu0 0.0
        %789 = vmatpush.msra.mxu0 0.0
        %790 = vmatpush.msra.mxu0 0.0
        %791 = vmatpush.msra.mxu0 0.0
        %792 = vmatpush.msra.mxu0 0.0
        %793 = vmatpush.msra.mxu0 0.0
        %794 = vmatpush.msra.mxu0 %v774
        %795 = vmatmul.f32.gmra.mxu0 %v777
        %v796 = vpop.f32.mrf.mxu0
        %v797 = vadd.f32 0.0, %v796
        %798 = vdwg.mxu0
        %v799 = vmul.f32 %v797, %v772
        %801 = vrot.lane.b32.xlu0 %v409, 4
        %v802 = vpop.permute.xlu0 %801
        %805 = vrot.lane.b32.xlu0 %v474, 8
        %v806 = vpop.permute.xlu0 %805
        %809 = vrot.lane.b32.xlu0 %v539, 12
        %v810 = vpop.permute.xlu0 %809
        %813 = vrot.lane.b32.xlu0 %v604, 16
        %v814 = vpop.permute.xlu0 %813
        %817 = vrot.lane.b32.xlu0 %v669, 20
        %v818 = vpop.permute.xlu0 %817
        %821 = vrot.lane.b32.xlu0 %v734, 24
        %v822 = vpop.permute.xlu0 %821
        %825 = vrot.lane.b32.xlu0 %v799, 28
        %v826 = vpop.permute.xlu0 %825
        %v828 = vsel %vm281, %v344, %v802
        %v829 = vsel %vm307, %v828, %v806
        %vm830 = vcmask 97280
        %v831 = vsel %vm830, %v829, %v810
        %vm832 = vcmask 130048
        %v833 = vsel %vm832, %v831, %v814
        %vm834 = vcmask 162816
        %v835 = vsel %vm834, %v833, %v818
        %vm836 = vcmask 195584
        %v837 = vsel %vm836, %v835, %v822
        %vm838 = vcmask 228352
        %v839 = vsel %vm838, %v837, %v826
        %v840 = vld [vmem:[#allocation7] sm:$0xff]
        %v841 = vld [vmem:[#allocation7 + $0x8] sm:$0xff]
        %v842 = vld [vmem:[#allocation7 + $0x10] sm:$0xff]
        %v843 = vld [vmem:[#allocation7 + $0x18] sm:$0xff]
        %v844 = vld [vmem:[%s3] sm:$0x1]
        %v846 = vperm.slane %v844, 0
        %v849 = vsel %vm253, %v839, 0
        %851 = vmatpush.msra.mxu0 0.0
        %852 = vmatpush.msra.mxu0 0.0
        %853 = vmatpush.msra.mxu0 0.0
        %854 = vmatpush.msra.mxu0 0.0
        %855 = vmatpush.msra.mxu0 0.0
        %856 = vmatpush.msra.mxu0 0.0
        %857 = vmatpush.msra.mxu0 0.0
        %858 = vmatpush.msra.mxu0 0.0
        %859 = vmatpush.msra.mxu0 0.0
        %860 = vmatpush.msra.mxu0 0.0
        %861 = vmatpush.msra.mxu0 0.0
        %862 = vmatpush.msra.mxu0 0.0
        %863 = vmatpush.msra.mxu0 %v843
        %864 = vmatpush.msra.mxu0 %v842
        %865 = vmatpush.msra.mxu0 %v841
        %866 = vmatpush.msra.mxu0 %v840
        %867 = vmatmul.f32.gmra.mxu0 %v849
        %v868 = vpop.f32.mrf.mxu0
        %v869 = vadd.f32 %v846, %v868
        %870 = vdwg.mxu0
        %871 = vst.msk [vmem:[%s247] sm:$0xff] %vm253, %v869
        %s872 = sand.u32 %s119, 1
        %s873 = scalar_lea.sflag [#allocation4], %s872
        %s874 = sand.u32 %s119, 1
        %s875 = smul.addr %s874, 8
        %s876 = scalar_lea.vmem [#allocation8], %s875
        // Predicated region
        $region49: #{tpu_custom_call.1} parent=35 // pred_check
          %p877 = pneg %p129
        $region50: #{tpu_custom_call.1} parent=35 // pred_check_branch
          %879 = sbr.rel (%p877) target = $region52
        $region51: #{tpu_custom_call.1} parent=35 // pred_region
          %881 = vsyncadd %s873, 0
          %s882 = smul.addr %s22, 8
          %s883 = scalar_lea.hbm %s4, %s882
          %s885 = sshll.u32 %s876, 4
          %s886 = int_to_ptr.vmem [resolvable:$true] %s885
          %s887 = sshll.u32 %s883, 4
          %s888 = int_to_ptr.hbm [resolvable:$true] %s887
          %890 = dma.vmem_to_hbm [thread:$0]  %s886, 128, %s888, %s873
        $region52: #{tpu_custom_call.1} parent=35 // pred_fallthru
          _
      $region36: #{tpu_custom_call.1} parent=5 // pred_fallthru
        _
      %p891 = scmp.le.s32.totalorder 2, %s17
      // Predicated region
      $region53: #{tpu_custom_call.1} parent=5 // pred_check
        %p892 = pneg %p891
      $region54: #{tpu_custom_call.1} parent=5 // pred_check_branch
        %894 = sbr.rel (%p892) target = $region56
      $region55: #{tpu_custom_call.1} parent=5 // pred_region
        %s895 = ssub.s32 %s17, 2
        // Predicated region
        $region57: #{tpu_custom_call.1} parent=55 // pred_check
          %p896 = pneg %p135
        $region58: #{tpu_custom_call.1} parent=55 // pred_check_branch
          %898 = sbr.rel (%p896) target = $region60
        $region59: #{tpu_custom_call.1} parent=55 // pred_region
          %s899 = sand.u32 %s120, 1
          %s900 = scalar_lea.sflag [#allocation4], %s899
          %s901 = sand.u32 %s120, 1
          %s902 = smul.addr %s901, 8
          %s903 = scalar_lea.vmem [#allocation8], %s902
          %905 = dma.done %s900, 128
        $region60: #{tpu_custom_call.1} parent=55 // pred_fallthru
          _
      $region56: #{tpu_custom_call.1} parent=5 // pred_fallthru
        _
    $region6: #{tpu_custom_call.1} parent=1 // loop_footer
      %s21 = sadd.s32 1, %s17
    $region7: #{tpu_custom_call.1} parent=1 // loop_footer_branch
      %16 = sbr.rel target = $region3
    $region8: #{tpu_custom_call.1} parent=1 // loop_exit
      _
    %906 = vsyncpa [#allocation3], 1
    %s907 = scalar_lea.sflag [#allocation3], 1
    %908 = vsyncpa %s907, 1
    %909 = vsyncpa [#allocation6], 1
    %910 = vsyncpa [#allocation4], 1
    %s911 = scalar_lea.sflag [#allocation4], 1
    %912 = vsyncpa %s911, 1

</llo_original>
